<compile_context>
chip_gen: v5e
topology: v5e:2x2
jax: 0.10.0
libtpu: 0.0.40
codegen_flags: <defaults>
</compile_context>

<pallas_src>
from functools import partial

import jax
import jax.numpy as jnp
from jax.experimental import pallas as pl
from jax.experimental.pallas import tpu as pltpu


def _round_up(n, m):
    return ((n + m - 1) // m) * m


def qnet_kernel(xt_ref, w1_ref, b1_ref, w2_ref, b2_ref, w3_ref, b3_ref, qt_ref):
    # xt: [4, TB] f32; w1: [64, 4] f32; w2: [64, 64]; w3: [A8, 64];
    # biases: [64, 1] / [64, 1] / [A8, 1] f32; qt: [A8, TB] f32.
    xt = xt_ref[...]
    w1 = w1_ref[...]

    # fc1 (K=4): four VPU outer-product FMAs; an MXU pass would be >90% zero padding.
    h1 = b1_ref[...]                                   # [64, 1] broadcasts over TB lanes
    for k in range(4):
        h1 = h1 + w1[:, k:k + 1] * xt[k:k + 1, :]      # [64,1] * [1,TB] -> [64,TB]
    h1 = jnp.maximum(h1, 0.0)                          # [64, TB] f32

    # fc2 on MXU: [64,64] @ [64,TB] -> [64,TB]; f32 accumulate, f32 elementwise.
    h2 = jnp.dot(w2_ref[...], h1.astype(w2_ref.dtype),
                 preferred_element_type=jnp.float32) + b2_ref[...]
    h2 = jnp.maximum(h2, 0.0)                          # [64, TB] f32

    # q_out on MXU: [A8,64] @ [64,TB] -> [A8,TB]; TB % 128 == 0 -> unmasked lane-dense vst.
    qt = jnp.dot(w3_ref[...], h2.astype(w3_ref.dtype),
                 preferred_element_type=jnp.float32) + b3_ref[...]
    qt_ref[...] = qt.astype(qt_ref.dtype)


@partial(jax.jit, static_argnames=("tile_b", "use_bf16"))
def custom_q_network(x, params, *, tile_b=2048, use_bf16=True):
    """Forward pass of CustomQNetwork.

    x: [B, 4] float32
    params (torch layout): w1 [64,4], b1 [64], w2 [64,64], b2 [64],
                           w3 [A,64], b3 [A]
    returns q_values: [B, A] float32
    """
    B, K = x.shape
    assert K == 4, "fc1 expects 4 input features"
    A = params["w3"].shape[0]

    # Batch tile: multiple of 128 so both the x^T input block and the q^T output
    # block are lane-dense (unmasked vst, contiguous DMA).  ~1.5 MiB of VMEM at
    # tile_b=2048 -> far under the 16 MiB (v5e) / 32 MiB (v6e/v7x) scoped limits.
    tile_b = min(int(tile_b), _round_up(B, 128))
    tile_b = max(128, _round_up(tile_b, 128))
    num_tiles = pl.cdiv(B, tile_b)
    b_pad = num_tiles * tile_b

    # Actions padded only to 8 sublanes (was 128 lanes) -> ~16x less output HBM traffic.
    a_pad = _round_up(max(A, 1), 8)

    mxu_dtype = jnp.bfloat16 if use_bf16 else jnp.float32

    # Transposed / padded operands. Under jit these preprocessing ops fuse into one
    # cheap pass (x is only 16 B/row), and the final slice+transpose fuses as well.
    xt = jnp.zeros((4, b_pad), jnp.float32).at[:, :B].set(x.astype(jnp.float32).T)

    w1 = params["w1"].astype(jnp.float32)                      # [64, 4]  VPU path -> f32
    b1 = params["b1"].reshape(-1, 1).astype(jnp.float32)       # [64, 1]
    w2 = params["w2"].astype(mxu_dtype)                        # [64, 64]
    b2 = params["b2"].reshape(-1, 1).astype(jnp.float32)       # [64, 1]
    w3 = jnp.zeros((a_pad, 64), mxu_dtype).at[:A, :].set(params["w3"].astype(mxu_dtype))
    b3 = jnp.zeros((a_pad, 1), jnp.float32).at[:A, 0].set(params["b3"].astype(jnp.float32))

    const = lambda i: (0, 0)   # weights/biases: single DMA, VMEM-resident across tiles

    qt = pl.pallas_call(
        qnet_kernel,
        out_shape=jax.ShapeDtypeStruct((a_pad, b_pad), jnp.float32),
        grid=(num_tiles,),
        in_specs=[
            pl.BlockSpec((4, tile_b), lambda i: (0, i)),   # x^T: tiled over batch (lane axis)
            pl.BlockSpec((64, 4), const),                  # w1
            pl.BlockSpec((64, 1), const),                  # b1
            pl.BlockSpec((64, 64), const),                 # w2
            pl.BlockSpec((64, 1), const),                  # b2
            pl.BlockSpec((a_pad, 64), const),              # w3 (sublane-padded)
            pl.BlockSpec((a_pad, 1), const),               # b3 (sublane-padded)
        ],
        out_specs=pl.BlockSpec((a_pad, tile_b), lambda i: (0, i)),
        compiler_params=pltpu.CompilerParams(
            dimension_semantics=("parallel",),             # megacore-shard batch on v7x
        ),
    )(xt, w1, b1, w2, b2, w3, b3)

    # Back to row-major [B, A]; fused into the surrounding jit (no standalone pass).
    return qt[:A, :B].T


def init_params(key, n_actions):
    """Mimics PyTorch nn.Linear default init (U[-1/sqrt(fan_in), 1/sqrt(fan_in)]).

    Weights are stored in torch layout [out, in]; the kernel uses them directly
    since its dataflow is transposed (W @ h).
    """
    def linear(k, fan_in, fan_out):
        kw, kb = jax.random.split(k)
        bound = 1.0 / jnp.sqrt(fan_in)
        w = jax.random.uniform(kw, (fan_out, fan_in), jnp.float32, -bound, bound)
        b = jax.random.uniform(kb, (fan_out,), jnp.float32, -bound, bound)
        return w, b

    k1, k2, k3 = jax.random.split(key, 3)
    w1, b1 = linear(k1, 4, 64)
    w2, b2 = linear(k2, 64, 64)
    w3, b3 = linear(k3, 64, n_actions)
    return {"w1": w1, "b1": b1, "w2": w2, "b2": b2, "w3": w3, "b3": b3}


def reference(x, p):
    hp = "highest"
    h1 = jnp.maximum(jnp.dot(x, p["w1"].T, precision=hp) + p["b1"], 0.0)
    h2 = jnp.maximum(jnp.dot(h1, p["w2"].T, precision=hp) + p["b2"], 0.0)
    return jnp.dot(h2, p["w3"].T, precision=hp) + p["b3"]


if __name__ == "__main__":
    key = jax.random.PRNGKey(0)
    k_params, k_x1, k_x2 = jax.random.split(key, 3)

    n_actions = 6   # synthetic Discrete(6) action space
    params = init_params(k_params, n_actions)

    # 1) Small inference-style batch, exact-semantics f32 MXU path.
    x_small = jax.random.normal(k_x1, (8, 4), jnp.float32)
    q_f32 = custom_q_network(x_small, params, use_bf16=False)
    jax.block_until_ready(q_f32)
    assert q_f32.shape == (8, n_actions)
    assert jnp.allclose(q_f32, reference(x_small, params), atol=1e-5, rtol=1e-5)

    # 2) bf16-MXU fast path (f32 accumulation) on a non-multiple batch with a
    #    non-multiple tile request (500 -> rounded to 512): exercises multi-tile
    #    grid, batch padding, and action sublane padding.
    x_big = jax.random.normal(k_x2, (1029, 4), jnp.float32)
    q_bf16 = custom_q_network(x_big, params, tile_b=500, use_bf16=True)
    jax.block_until_ready(q_bf16)
    assert q_bf16.shape == (1029, n_actions)
    assert jnp.allclose(q_bf16, reference(x_big, params), atol=3e-2, rtol=3e-2)

    print("KERNEL_OK")
</pallas_src>

<mosaic_0001>
module attributes {stable_mosaic.version = 11 : i64} {
  func.func @qnet_kernel(%arg0: i32, %arg1: memref<4x128xf32, #tpu.memory_space<vmem>>, %arg2: memref<64x4xf32, #tpu.memory_space<vmem>>, %arg3: memref<64x1xf32, #tpu.memory_space<vmem>>, %arg4: memref<64x64xf32, #tpu.memory_space<vmem>>, %arg5: memref<64x1xf32, #tpu.memory_space<vmem>>, %arg6: memref<8x64xf32, #tpu.memory_space<vmem>>, %arg7: memref<8x1xf32, #tpu.memory_space<vmem>>, %arg8: memref<8x128xf32, #tpu.memory_space<vmem>>) attributes {dimension_semantics = [#tpu.dimension_semantics<parallel>], iteration_bounds = array<i64: 1>, scalar_prefetch = 0 : i64, scratch_operands = 0 : i64, tpu.core_type = #tpu.core_type<tc>, window_params = [{transform_indices = @transform_0, window_bounds = array<i64: 4, 128>}, {pipeline_mode = #tpu.pipeline_mode<synchronous>, transform_indices = @transform_1, window_bounds = array<i64: 64, 4>}, {pipeline_mode = #tpu.pipeline_mode<synchronous>, transform_indices = @transform_2, window_bounds = array<i64: 64, 1>}, {pipeline_mode = #tpu.pipeline_mode<synchronous>, transform_indices = @transform_3, window_bounds = array<i64: 64, 64>}, {pipeline_mode = #tpu.pipeline_mode<synchronous>, transform_indices = @transform_4, window_bounds = array<i64: 64, 1>}, {pipeline_mode = #tpu.pipeline_mode<synchronous>, transform_indices = @transform_5, window_bounds = array<i64: 8, 64>}, {pipeline_mode = #tpu.pipeline_mode<synchronous>, transform_indices = @transform_6, window_bounds = array<i64: 8, 1>}, {transform_indices = @transform_7, window_bounds = array<i64: 8, 128>}]} {
    %c0 = arith.constant 0 : index
    %c0_0 = arith.constant 0 : index
    %0 = vector.load %arg1[%c0, %c0_0] : memref<4x128xf32, #tpu.memory_space<vmem>>, vector<4x128xf32>
    %c0_1 = arith.constant 0 : index
    %c0_2 = arith.constant 0 : index
    %1 = vector.load %arg2[%c0_1, %c0_2] : memref<64x4xf32, #tpu.memory_space<vmem>>, vector<64x4xf32>
    %c0_3 = arith.constant 0 : index
    %c0_4 = arith.constant 0 : index
    %2 = vector.load %arg3[%c0_3, %c0_4] : memref<64x1xf32, #tpu.memory_space<vmem>>, vector<64x1xf32>
    %3 = vector.extract_strided_slice %1 {offsets = [0, 0], sizes = [64, 1], strides = [1, 1]} : vector<64x4xf32> to vector<64x1xf32>
    %4 = vector.extract_strided_slice %0 {offsets = [0, 0], sizes = [1, 128], strides = [1, 1]} : vector<4x128xf32> to vector<1x128xf32>
    %5 = vector.broadcast %3 : vector<64x1xf32> to vector<64x128xf32>
    %6 = vector.broadcast %4 : vector<1x128xf32> to vector<64x128xf32>
    %7 = arith.mulf %5, %6 : vector<64x128xf32>
    %8 = vector.broadcast %2 : vector<64x1xf32> to vector<64x128xf32>
    %9 = arith.addf %8, %7 : vector<64x128xf32>
    %10 = vector.extract_strided_slice %1 {offsets = [0, 1], sizes = [64, 1], strides = [1, 1]} : vector<64x4xf32> to vector<64x1xf32>
    %11 = vector.extract_strided_slice %0 {offsets = [1, 0], sizes = [1, 128], strides = [1, 1]} : vector<4x128xf32> to vector<1x128xf32>
    %12 = vector.broadcast %10 : vector<64x1xf32> to vector<64x128xf32>
    %13 = vector.broadcast %11 : vector<1x128xf32> to vector<64x128xf32>
    %14 = arith.mulf %12, %13 : vector<64x128xf32>
    %15 = arith.addf %9, %14 : vector<64x128xf32>
    %16 = vector.extract_strided_slice %1 {offsets = [0, 2], sizes = [64, 1], strides = [1, 1]} : vector<64x4xf32> to vector<64x1xf32>
    %17 = vector.extract_strided_slice %0 {offsets = [2, 0], sizes = [1, 128], strides = [1, 1]} : vector<4x128xf32> to vector<1x128xf32>
    %18 = vector.broadcast %16 : vector<64x1xf32> to vector<64x128xf32>
    %19 = vector.broadcast %17 : vector<1x128xf32> to vector<64x128xf32>
    %20 = arith.mulf %18, %19 : vector<64x128xf32>
    %21 = arith.addf %15, %20 : vector<64x128xf32>
    %22 = vector.extract_strided_slice %1 {offsets = [0, 3], sizes = [64, 1], strides = [1, 1]} : vector<64x4xf32> to vector<64x1xf32>
    %23 = vector.extract_strided_slice %0 {offsets = [3, 0], sizes = [1, 128], strides = [1, 1]} : vector<4x128xf32> to vector<1x128xf32>
    %24 = vector.broadcast %22 : vector<64x1xf32> to vector<64x128xf32>
    %25 = vector.broadcast %23 : vector<1x128xf32> to vector<64x128xf32>
    %26 = arith.mulf %24, %25 : vector<64x128xf32>
    %27 = arith.addf %21, %26 : vector<64x128xf32>
    %cst = arith.constant 0.000000e+00 : f32
    %28 = vector.broadcast %cst : f32 to vector<64x128xf32>
    %29 = arith.maximumf %27, %28 : vector<64x128xf32>
    %c0_5 = arith.constant 0 : index
    %c0_6 = arith.constant 0 : index
    %30 = vector.load %arg4[%c0_5, %c0_6] : memref<64x64xf32, #tpu.memory_space<vmem>>, vector<64x64xf32>
    %cst_7 = arith.constant dense<0.000000e+00> : vector<64x128xf32>
    %31 = tpu.matmul %30, %29, %cst_7 {dimension_numbers = #tpu.dot_dimension_numbers<[1], [0], [0], [1], [0, 0, 1, 1], [], []>} : vector<64x64xf32>, vector<64x128xf32>, vector<64x128xf32> -> vector<64x128xf32>
    %c0_8 = arith.constant 0 : index
    %c0_9 = arith.constant 0 : index
    %32 = vector.load %arg5[%c0_8, %c0_9] : memref<64x1xf32, #tpu.memory_space<vmem>>, vector<64x1xf32>
    %33 = vector.broadcast %32 : vector<64x1xf32> to vector<64x128xf32>
    %34 = arith.addf %31, %33 : vector<64x128xf32>
    %cst_10 = arith.constant 0.000000e+00 : f32
    %35 = vector.broadcast %cst_10 : f32 to vector<64x128xf32>
    %36 = arith.maximumf %34, %35 : vector<64x128xf32>
    %c0_11 = arith.constant 0 : index
    %c0_12 = arith.constant 0 : index
    %37 = vector.load %arg6[%c0_11, %c0_12] : memref<8x64xf32, #tpu.memory_space<vmem>>, vector<8x64xf32>
    %cst_13 = arith.constant dense<0.000000e+00> : vector<8x128xf32>
    %38 = tpu.matmul %37, %36, %cst_13 {dimension_numbers = #tpu.dot_dimension_numbers<[1], [0], [0], [1], [0, 0, 1, 1], [], []>} : vector<8x64xf32>, vector<64x128xf32>, vector<8x128xf32> -> vector<8x128xf32>
    %c0_14 = arith.constant 0 : index
    %c0_15 = arith.constant 0 : index
    %39 = vector.load %arg7[%c0_14, %c0_15] : memref<8x1xf32, #tpu.memory_space<vmem>>, vector<8x1xf32>
    %40 = vector.broadcast %39 : vector<8x1xf32> to vector<8x128xf32>
    %41 = arith.addf %38, %40 : vector<8x128xf32>
    %c0_16 = arith.constant 0 : index
    %c0_17 = arith.constant 0 : index
    %42 = vector.load %arg8[%c0_16, %c0_17] : memref<8x128xf32, #tpu.memory_space<vmem>>, vector<8x128xf32>
    tpu.vector_store %arg8[%c0_16, %c0_17], %41 {strides = array<i32>} : memref<8x128xf32, #tpu.memory_space<vmem>>, vector<8x128xf32>,
    return
  }
  func.func @transform_0(%arg0: i32) -> (i32, i32) {
    %c0_i32 = arith.constant 0 : i32
    %c0_i32_0 = arith.constant 0 : i32
    return %c0_i32, %arg0 : i32, i32
  }
  func.func @transform_1(%arg0: i32) -> (i32, i32) {
    %c0_i32 = arith.constant 0 : i32
    %c0_i32_0 = arith.constant 0 : i32
    %c0_i32_1 = arith.constant 0 : i32
    return %c0_i32, %c0_i32_0 : i32, i32
  }
  func.func @transform_2(%arg0: i32) -> (i32, i32) {
    %c0_i32 = arith.constant 0 : i32
    %c0_i32_0 = arith.constant 0 : i32
    %c0_i32_1 = arith.constant 0 : i32
    return %c0_i32, %c0_i32_0 : i32, i32
  }
  func.func @transform_3(%arg0: i32) -> (i32, i32) {
    %c0_i32 = arith.constant 0 : i32
    %c0_i32_0 = arith.constant 0 : i32
    %c0_i32_1 = arith.constant 0 : i32
    return %c0_i32, %c0_i32_0 : i32, i32
  }
  func.func @transform_4(%arg0: i32) -> (i32, i32) {
    %c0_i32 = arith.constant 0 : i32
    %c0_i32_0 = arith.constant 0 : i32
    %c0_i32_1 = arith.constant 0 : i32
    return %c0_i32, %c0_i32_0 : i32, i32
  }
  func.func @transform_5(%arg0: i32) -> (i32, i32) {
    %c0_i32 = arith.constant 0 : i32
    %c0_i32_0 = arith.constant 0 : i32
    %c0_i32_1 = arith.constant 0 : i32
    return %c0_i32, %c0_i32_0 : i32, i32
  }
  func.func @transform_6(%arg0: i32) -> (i32, i32) {
    %c0_i32 = arith.constant 0 : i32
    %c0_i32_0 = arith.constant 0 : i32
    %c0_i32_1 = arith.constant 0 : i32
    return %c0_i32, %c0_i32_0 : i32, i32
  }
  func.func @transform_7(%arg0: i32) -> (i32, i32) {
    %c0_i32 = arith.constant 0 : i32
    %c0_i32_0 = arith.constant 0 : i32
    return %c0_i32, %arg0 : i32, i32
  }
}

</mosaic_0001>

<llo_original>
// kernel: custom_q_network.1
$region0: #{custom_q_network.1}
  #allocation0 [shape = 'u32[]', space=smem, size = 0x4, offset = 0x4, fixed_abs, tag = 'smem constant byte address 0x4 - core index']
  #allocation1 [shape = 'u32[72,128]{1,0:T(1,128)}', space=vmem, size = 0x9000, scoped, tag = 'internal scratch']
  %s0 = inlined_call_operand.vmem [shape: f32[4,128], index: 0, kind: input, shape index: {}]
  %s1 = inlined_call_operand.vmem [shape: f32[64,4], index: 1, kind: input, shape index: {}]
  %s2 = inlined_call_operand.vmem [shape: f32[64,1], index: 2, kind: input, shape index: {}]
  %s3 = inlined_call_operand.vmem [shape: f32[64,64], index: 3, kind: input, shape index: {}]
  %s4 = inlined_call_operand.vmem [shape: f32[64,1], index: 4, kind: input, shape index: {}]
  %s5 = inlined_call_operand.vmem [shape: f32[8,64], index: 5, kind: input, shape index: {}]
  %s6 = inlined_call_operand.vmem [shape: f32[8,1], index: 6, kind: input, shape index: {}]
  %s7 = inlined_call_operand.vmem [shape: f32[8,128], index: 7, kind: output, shape index: {}]
  %s8 = sld [smem:[#allocation0]]
  $region38: #{custom_q_network.1} parent=0
    _
  %s10 = ssub.s32 1, %s8
  %s11 = scalar_select 0, %s10, %s8
  // Predicated region
  $region2: #{custom_q_network.1} parent=0 // pred_check
    _
  $region3: #{custom_q_network.1} parent=0 // pred_check_branch
    %13 = sbr.rel (0) target = $region5
  $region4: #{custom_q_network.1} parent=0 // pred_region
    _
  $region5: #{custom_q_network.1} parent=0 // pred_fallthru
    _
  // Predicated region
  $region6: #{custom_q_network.1} parent=0 // pred_check
    _
  $region7: #{custom_q_network.1} parent=0 // pred_check_branch
    %15 = sbr.rel (0) target = $region9
  $region8: #{custom_q_network.1} parent=0 // pred_region
    _
  $region9: #{custom_q_network.1} parent=0 // pred_fallthru
    _
  // Predicated region
  $region10: #{custom_q_network.1} parent=0 // pred_check
    _
  $region11: #{custom_q_network.1} parent=0 // pred_check_branch
    %17 = sbr.rel (0) target = $region13
  $region12: #{custom_q_network.1} parent=0 // pred_region
    _
  $region13: #{custom_q_network.1} parent=0 // pred_fallthru
    _
  // Predicated region
  $region14: #{custom_q_network.1} parent=0 // pred_check
    _
  $region15: #{custom_q_network.1} parent=0 // pred_check_branch
    %19 = sbr.rel (0) target = $region17
  $region16: #{custom_q_network.1} parent=0 // pred_region
    _
  $region17: #{custom_q_network.1} parent=0 // pred_fallthru
    _
  // Predicated region
  $region18: #{custom_q_network.1} parent=0 // pred_check
    _
  $region19: #{custom_q_network.1} parent=0 // pred_check_branch
    %21 = sbr.rel (0) target = $region21
  $region20: #{custom_q_network.1} parent=0 // pred_region
    _
  $region21: #{custom_q_network.1} parent=0 // pred_fallthru
    _
  // Predicated region
  $region22: #{custom_q_network.1} parent=0 // pred_check
    _
  $region23: #{custom_q_network.1} parent=0 // pred_check_branch
    %23 = sbr.rel (0) target = $region25
  $region24: #{custom_q_network.1} parent=0 // pred_region
    _
  $region25: #{custom_q_network.1} parent=0 // pred_fallthru
    _
  // Predicated region
  $region26: #{custom_q_network.1} parent=0 // pred_check
    _
  $region27: #{custom_q_network.1} parent=0 // pred_check_branch
    %25 = sbr.rel (0) target = $region29
  $region28: #{custom_q_network.1} parent=0 // pred_region
    _
  $region29: #{custom_q_network.1} parent=0 // pred_fallthru
    _
  %v26 = vld [vmem:[%s0] sm:$0xf]
  %v27 = vld [vmem:[%s1] sm:$0xff]
  %v28 = vld [vmem:[%s1 + $0x8] sm:$0xff]
  %v29 = vld [vmem:[%s1 + $0x10] sm:$0xff]
  %v30 = vld [vmem:[%s1 + $0x18] sm:$0xff]
  %v31 = vld [vmem:[%s1 + $0x20] sm:$0xff]
  %v32 = vld [vmem:[%s1 + $0x28] sm:$0xff]
  %v33 = vld [vmem:[%s1 + $0x30] sm:$0xff]
  %v34 = vld [vmem:[%s1 + $0x38] sm:$0xff]
  %v35 = vld [vmem:[%s2] sm:$0xff]
  %v36 = vld [vmem:[%s2 + $0x8] sm:$0xff]
  %v37 = vld [vmem:[%s2 + $0x10] sm:$0xff]
  %v38 = vld [vmem:[%s2 + $0x18] sm:$0xff]
  %v39 = vld [vmem:[%s2 + $0x20] sm:$0xff]
  %v40 = vld [vmem:[%s2 + $0x28] sm:$0xff]
  %v41 = vld [vmem:[%s2 + $0x30] sm:$0xff]
  %v42 = vld [vmem:[%s2 + $0x38] sm:$0xff]
  %44 = vset.pattern.permute.xlu0 0
  %45 = vperm.xlu0 %44, %v27
  %v46 = vpop.permute.xlu0 %45
  %49 = vset.pattern.permute.xlu0 0
  %50 = vperm.xlu0 %49, %v28
  %v51 = vpop.permute.xlu0 %50
  %54 = vset.pattern.permute.xlu0 0
  %55 = vperm.xlu0 %54, %v29
  %v56 = vpop.permute.xlu0 %55
  %59 = vset.pattern.permute.xlu0 0
  %60 = vperm.xlu0 %59, %v30
  %v61 = vpop.permute.xlu0 %60
  %64 = vset.pattern.permute.xlu0 0
  %65 = vperm.xlu0 %64, %v31
  %v66 = vpop.permute.xlu0 %65
  %69 = vset.pattern.permute.xlu0 0
  %70 = vperm.xlu0 %69, %v32
  %v71 = vpop.permute.xlu0 %70
  %74 = vset.pattern.permute.xlu0 0
  %75 = vperm.xlu0 %74, %v33
  %v76 = vpop.permute.xlu0 %75
  %79 = vset.pattern.permute.xlu0 0
  %80 = vperm.xlu0 %79, %v34
  %v81 = vpop.permute.xlu0 %80
  %v83 = vperm.slane %v26, 0
  %v84 = vmul.f32 %v46, %v83
  %v85 = vmul.f32 %v51, %v83
  %v86 = vmul.f32 %v56, %v83
  %v87 = vmul.f32 %v61, %v83
  %v88 = vmul.f32 %v66, %v83
  %v89 = vmul.f32 %v71, %v83
  %v90 = vmul.f32 %v76, %v83
  %v91 = vmul.f32 %v81, %v83
  %93 = vset.pattern.permute.xlu0 0
  %94 = vperm.xlu0 %93, %v35
  %v95 = vpop.permute.xlu0 %94
  %98 = vset.pattern.permute.xlu0 0
  %99 = vperm.xlu0 %98, %v36
  %v100 = vpop.permute.xlu0 %99
  %103 = vset.pattern.permute.xlu0 0
  %104 = vperm.xlu0 %103, %v37
  %v105 = vpop.permute.xlu0 %104
  %108 = vset.pattern.permute.xlu0 0
  %109 = vperm.xlu0 %108, %v38
  %v110 = vpop.permute.xlu0 %109
  %113 = vset.pattern.permute.xlu0 0
  %114 = vperm.xlu0 %113, %v39
  %v115 = vpop.permute.xlu0 %114
  %118 = vset.pattern.permute.xlu0 0
  %119 = vperm.xlu0 %118, %v40
  %v120 = vpop.permute.xlu0 %119
  %123 = vset.pattern.permute.xlu0 0
  %124 = vperm.xlu0 %123, %v41
  %v125 = vpop.permute.xlu0 %124
  %128 = vset.pattern.permute.xlu0 0
  %129 = vperm.xlu0 %128, %v42
  %v130 = vpop.permute.xlu0 %129
  %v132 = vadd.f32 %v95, %v84
  %v133 = vadd.f32 %v100, %v85
  %v134 = vadd.f32 %v105, %v86
  %v135 = vadd.f32 %v110, %v87
  %v136 = vadd.f32 %v115, %v88
  %v137 = vadd.f32 %v120, %v89
  %v138 = vadd.f32 %v125, %v90
  %v139 = vadd.f32 %v130, %v91
  %140 = vset.pattern.permute.xlu0 1
  %141 = vperm.xlu0 %140, %v27
  %v142 = vpop.permute.xlu0 %141
  %144 = vset.pattern.permute.xlu0 1
  %145 = vperm.xlu0 %144, %v28
  %v146 = vpop.permute.xlu0 %145
  %148 = vset.pattern.permute.xlu0 1
  %149 = vperm.xlu0 %148, %v29
  %v150 = vpop.permute.xlu0 %149
  %152 = vset.pattern.permute.xlu0 1
  %153 = vperm.xlu0 %152, %v30
  %v154 = vpop.permute.xlu0 %153
  %156 = vset.pattern.permute.xlu0 1
  %157 = vperm.xlu0 %156, %v31
  %v158 = vpop.permute.xlu0 %157
  %160 = vset.pattern.permute.xlu0 1
  %161 = vperm.xlu0 %160, %v32
  %v162 = vpop.permute.xlu0 %161
  %164 = vset.pattern.permute.xlu0 1
  %165 = vperm.xlu0 %164, %v33
  %v166 = vpop.permute.xlu0 %165
  %168 = vset.pattern.permute.xlu0 1
  %169 = vperm.xlu0 %168, %v34
  %v170 = vpop.permute.xlu0 %169
  %v172 = vperm.slane %v26, 1
  %v173 = vmul.f32 %v142, %v172
  %v174 = vmul.f32 %v146, %v172
  %v175 = vmul.f32 %v150, %v172
  %v176 = vmul.f32 %v154, %v172
  %v177 = vmul.f32 %v158, %v172
  %v178 = vmul.f32 %v162, %v172
  %v179 = vmul.f32 %v166, %v172
  %v180 = vmul.f32 %v170, %v172
  %v181 = vadd.f32 %v132, %v173
  %v182 = vadd.f32 %v133, %v174
  %v183 = vadd.f32 %v134, %v175
  %v184 = vadd.f32 %v135, %v176
  %v185 = vadd.f32 %v136, %v177
  %v186 = vadd.f32 %v137, %v178
  %v187 = vadd.f32 %v138, %v179
  %v188 = vadd.f32 %v139, %v180
  %189 = vset.pattern.permute.xlu0 2
  %190 = vperm.xlu0 %189, %v27
  %v191 = vpop.permute.xlu0 %190
  %193 = vset.pattern.permute.xlu0 2
  %194 = vperm.xlu0 %193, %v28
  %v195 = vpop.permute.xlu0 %194
  %197 = vset.pattern.permute.xlu0 2
  %198 = vperm.xlu0 %197, %v29
  %v199 = vpop.permute.xlu0 %198
  %201 = vset.pattern.permute.xlu0 2
  %202 = vperm.xlu0 %201, %v30
  %v203 = vpop.permute.xlu0 %202
  %205 = vset.pattern.permute.xlu0 2
  %206 = vperm.xlu0 %205, %v31
  %v207 = vpop.permute.xlu0 %206
  %209 = vset.pattern.permute.xlu0 2
  %210 = vperm.xlu0 %209, %v32
  %v211 = vpop.permute.xlu0 %210
  %213 = vset.pattern.permute.xlu0 2
  %214 = vperm.xlu0 %213, %v33
  %v215 = vpop.permute.xlu0 %214
  %217 = vset.pattern.permute.xlu0 2
  %218 = vperm.xlu0 %217, %v34
  %v219 = vpop.permute.xlu0 %218
  %v221 = vperm.slane %v26, 2
  %v222 = vmul.f32 %v191, %v221
  %v223 = vmul.f32 %v195, %v221
  %v224 = vmul.f32 %v199, %v221
  %v225 = vmul.f32 %v203, %v221
  %v226 = vmul.f32 %v207, %v221
  %v227 = vmul.f32 %v211, %v221
  %v228 = vmul.f32 %v215, %v221
  %v229 = vmul.f32 %v219, %v221
  %v230 = vadd.f32 %v181, %v222
  %v231 = vadd.f32 %v182, %v223
  %v232 = vadd.f32 %v183, %v224
  %v233 = vadd.f32 %v184, %v225
  %v234 = vadd.f32 %v185, %v226
  %v235 = vadd.f32 %v186, %v227
  %v236 = vadd.f32 %v187, %v228
  %v237 = vadd.f32 %v188, %v229
  %238 = vset.pattern.permute.xlu0 3
  %239 = vperm.xlu0 %238, %v27
  %v240 = vpop.permute.xlu0 %239
  %242 = vset.pattern.permute.xlu0 3
  %243 = vperm.xlu0 %242, %v28
  %v244 = vpop.permute.xlu0 %243
  %246 = vset.pattern.permute.xlu0 3
  %247 = vperm.xlu0 %246, %v29
  %v248 = vpop.permute.xlu0 %247
  %250 = vset.pattern.permute.xlu0 3
  %251 = vperm.xlu0 %250, %v30
  %v252 = vpop.permute.xlu0 %251
  %254 = vset.pattern.permute.xlu0 3
  %255 = vperm.xlu0 %254, %v31
  %v256 = vpop.permute.xlu0 %255
  %258 = vset.pattern.permute.xlu0 3
  %259 = vperm.xlu0 %258, %v32
  %v260 = vpop.permute.xlu0 %259
  %262 = vset.pattern.permute.xlu0 3
  %263 = vperm.xlu0 %262, %v33
  %v264 = vpop.permute.xlu0 %263
  %266 = vset.pattern.permute.xlu0 3
  %267 = vperm.xlu0 %266, %v34
  %v268 = vpop.permute.xlu0 %267
  %v270 = vperm.slane %v26, 3
  %v271 = vmul.f32 %v240, %v270
  %v272 = vmul.f32 %v244, %v270
  %v273 = vmul.f32 %v248, %v270
  %v274 = vmul.f32 %v252, %v270
  %v275 = vmul.f32 %v256, %v270
  %v276 = vmul.f32 %v260, %v270
  %v277 = vmul.f32 %v264, %v270
  %v278 = vmul.f32 %v268, %v270
  %v279 = vadd.f32 %v230, %v271
  %v280 = vadd.f32 %v231, %v272
  %v281 = vadd.f32 %v232, %v273
  %v282 = vadd.f32 %v233, %v274
  %v283 = vadd.f32 %v234, %v275
  %v284 = vadd.f32 %v235, %v276
  %v285 = vadd.f32 %v236, %v277
  %v286 = vadd.f32 %v237, %v278
  %v287 = vmax.f32 %v279, 0.0
  %v288 = vmax.f32 %v280, 0.0
  %v289 = vmax.f32 %v281, 0.0
  %v290 = vmax.f32 %v282, 0.0
  %v291 = vmax.f32 %v283, 0.0
  %v292 = vmax.f32 %v284, 0.0
  %v293 = vmax.f32 %v285, 0.0
  %v294 = vmax.f32 %v286, 0.0
  %v295 = vld [vmem:[%s3] sm:$0xff]
  %v296 = vld [vmem:[%s3 + $0x8] sm:$0xff]
  %v297 = vld [vmem:[%s3 + $0x10] sm:$0xff]
  %v298 = vld [vmem:[%s3 + $0x18] sm:$0xff]
  %v299 = vld [vmem:[%s3 + $0x20] sm:$0xff]
  %v300 = vld [vmem:[%s3 + $0x28] sm:$0xff]
  %v301 = vld [vmem:[%s3 + $0x30] sm:$0xff]
  %v302 = vld [vmem:[%s3 + $0x38] sm:$0xff]
  %v303 = vld [vmem:[%s4] sm:$0xff]
  %v304 = vld [vmem:[%s4 + $0x8] sm:$0xff]
  %v305 = vld [vmem:[%s4 + $0x10] sm:$0xff]
  %v306 = vld [vmem:[%s4 + $0x18] sm:$0xff]
  %v307 = vld [vmem:[%s4 + $0x20] sm:$0xff]
  %v308 = vld [vmem:[%s4 + $0x28] sm:$0xff]
  %v309 = vld [vmem:[%s4 + $0x30] sm:$0xff]
  %v310 = vld [vmem:[%s4 + $0x38] sm:$0xff]
  %312 = vset.pattern.permute.xlu0 0
  %313 = vperm.xlu0 %312, %v303
  %v314 = vpop.permute.xlu0 %313
  %317 = vset.pattern.permute.xlu0 0
  %318 = vperm.xlu0 %317, %v304
  %v319 = vpop.permute.xlu0 %318
  %322 = vset.pattern.permute.xlu0 0
  %323 = vperm.xlu0 %322, %v305
  %v324 = vpop.permute.xlu0 %323
  %327 = vset.pattern.permute.xlu0 0
  %328 = vperm.xlu0 %327, %v306
  %v329 = vpop.permute.xlu0 %328
  %332 = vset.pattern.permute.xlu0 0
  %333 = vperm.xlu0 %332, %v307
  %v334 = vpop.permute.xlu0 %333
  %337 = vset.pattern.permute.xlu0 0
  %338 = vperm.xlu0 %337, %v308
  %v339 = vpop.permute.xlu0 %338
  %342 = vset.pattern.permute.xlu0 0
  %343 = vperm.xlu0 %342, %v309
  %v344 = vpop.permute.xlu0 %343
  %347 = vset.pattern.permute.xlu0 0
  %348 = vperm.xlu0 %347, %v310
  %v349 = vpop.permute.xlu0 %348
  %vm351 = vcmask 523264
  %v353 = vsel %vm351, %v295, 0
  %v356 = vsel %vm351, %v296, 0
  %v359 = vsel %vm351, %v297, 0
  %v362 = vsel %vm351, %v298, 0
  %v365 = vsel %vm351, %v299, 0
  %v368 = vsel %vm351, %v300, 0
  %v371 = vsel %vm351, %v301, 0
  %v374 = vsel %vm351, %v302, 0
  %376 = vmatpush.msra.mxu0 0.0
  %377 = vmatpush.msra.mxu0 0.0
  %378 = vmatpush.msra.mxu0 0.0
  %379 = vmatpush.msra.mxu0 0.0
  %380 = vmatpush.msra.mxu0 0.0
  %381 = vmatpush.msra.mxu0 0.0
  %382 = vmatpush.msra.mxu0 0.0
  %383 = vmatpush.msra.mxu0 0.0
  %384 = vmatpush.msra.mxu0 %v294
  %385 = vmatpush.msra.mxu0 %v293
  %386 = vmatpush.msra.mxu0 %v292
  %387 = vmatpush.msra.mxu0 %v291
  %388 = vmatpush.msra.mxu0 %v290
  %389 = vmatpush.msra.mxu0 %v289
  %390 = vmatpush.msra.mxu0 %v288
  %391 = vmatpush.msra.mxu0 %v287
  %392 = vmatmul.f32.gmra.mxu0 %v353
  %v393 = vpop.f32.mrf.mxu0
  %v394 = vadd.f32 %v314, %v393
  %395 = vmatmul.f32.gmra.mxu0 %v356
  %v396 = vpop.f32.mrf.mxu0
  %v397 = vadd.f32 %v319, %v396
  %398 = vmatmul.f32.gmra.mxu0 %v359
  %v399 = vpop.f32.mrf.mxu0
  %v400 = vadd.f32 %v324, %v399
  %401 = vmatmul.f32.gmra.mxu0 %v362
  %v402 = vpop.f32.mrf.mxu0
  %v403 = vadd.f32 %v329, %v402
  %404 = vmatmul.f32.gmra.mxu0 %v365
  %v405 = vpop.f32.mrf.mxu0
  %v406 = vadd.f32 %v334, %v405
  %407 = vmatmul.f32.gmra.mxu0 %v368
  %v408 = vpop.f32.mrf.mxu0
  %v409 = vadd.f32 %v339, %v408
  %410 = vmatmul.f32.gmra.mxu0 %v371
  %v411 = vpop.f32.mrf.mxu0
  %v412 = vadd.f32 %v344, %v411
  %413 = vmatmul.f32.gmra.mxu0 %v374
  %v414 = vpop.f32.mrf.mxu0
  %v415 = vadd.f32 %v349, %v414
  %416 = vdwg.mxu0
  %v417 = vmax.f32 %v394, 0.0
  %v418 = vmax.f32 %v397, 0.0
  %v419 = vmax.f32 %v400, 0.0
  %v420 = vmax.f32 %v403, 0.0
  %v421 = vmax.f32 %v406, 0.0
  %v422 = vmax.f32 %v409, 0.0
  %v423 = vmax.f32 %v412, 0.0
  %v424 = vmax.f32 %v415, 0.0
  %v425 = vld [vmem:[%s5] sm:$0xff]
  %v426 = vld [vmem:[%s6] sm:$0xff]
  %428 = vset.pattern.permute.xlu0 0
  %429 = vperm.xlu0 %428, %v426
  %v430 = vpop.permute.xlu0 %429
  %v433 = vsel %vm351, %v425, 0
  %435 = vmatpush.msra.mxu0 0.0
  %436 = vmatpush.msra.mxu0 0.0
  %437 = vmatpush.msra.mxu0 0.0
  %438 = vmatpush.msra.mxu0 0.0
  %439 = vmatpush.msra.mxu0 0.0
  %440 = vmatpush.msra.mxu0 0.0
  %441 = vmatpush.msra.mxu0 0.0
  %442 = vmatpush.msra.mxu0 0.0
  %443 = vmatpush.msra.mxu0 %v424
  %444 = vmatpush.msra.mxu0 %v423
  %445 = vmatpush.msra.mxu0 %v422
  %446 = vmatpush.msra.mxu0 %v421
  %447 = vmatpush.msra.mxu0 %v420
  %448 = vmatpush.msra.mxu0 %v419
  %449 = vmatpush.msra.mxu0 %v418
  %450 = vmatpush.msra.mxu0 %v417
  %451 = vmatmul.f32.gmra.mxu0 %v433
  %v452 = vpop.f32.mrf.mxu0
  %v453 = vadd.f32 %v430, %v452
  %454 = vdwg.mxu0
  %455 = vst [vmem:[%s7] sm:$0xff] %v453
  // Predicated region
  $region30: #{custom_q_network.1} parent=0 // pred_check
    _
  $region31: #{custom_q_network.1} parent=0 // pred_check_branch
    %457 = sbr.rel (0) target = $region33
  $region32: #{custom_q_network.1} parent=0 // pred_region
    _
  $region33: #{custom_q_network.1} parent=0 // pred_fallthru
    _
  // Predicated region
  $region34: #{custom_q_network.1} parent=0 // pred_check
    _
  $region35: #{custom_q_network.1} parent=0 // pred_check_branch
    %459 = sbr.rel (0) target = $region37
  $region36: #{custom_q_network.1} parent=0 // pred_region
    _
  $region37: #{custom_q_network.1} parent=0 // pred_fallthru
    _

</llo_original>
